<compile_context>
chip_gen: v7x
topology: tpu7x:2x2x1
jax: 0.10.0
libtpu: 0.0.40
codegen_flags: <defaults>
</compile_context>

<pallas_src>
import functools

import jax
import jax.numpy as jnp
from jax.experimental import pallas as pl
from jax.experimental.pallas import tpu as pltpu


def _round_up(v, m):
    return (v + m - 1) // m * m


def gaussian_sample_kernel(x_ref, w_ref, b_ref, eps_ref,
                           z_ref, mu_ref, lv_ref, *, out_pad):
    x = x_ref[...]

    # Fused linear: [mu | log_var_pre] = x @ [W_mu | W_lv] + [b_mu | b_lv]
    lin = jnp.dot(x, w_ref[...], preferred_element_type=jnp.float32) + b_ref[...]

    mu = lin[:, :out_pad]
    mu_ref[...] = mu.astype(mu_ref.dtype)            # store early (shorter live range)

    lv_lin = lin[:, out_pad:]
    # numerically stable softplus: max(t, 0) + log1p(exp(-|t|))
    log_var = jnp.maximum(lv_lin, 0.0) + jnp.log1p(jnp.exp(-jnp.abs(lv_lin)))
    lv_ref[...] = log_var.astype(lv_ref.dtype)       # store early

    # reparameterization trick: z = mu + exp(0.5 * log_var) * eps
    z = mu + jnp.exp(0.5 * log_var) * eps_ref[...]
    z_ref[...] = z.astype(z_ref.dtype)


def gaussian_sample(x, w_mu, b_mu, w_lv, b_lv, eps, *, max_tm=512):
    """x: (B, IN); w_*: (IN, OUT); b_*: (OUT,); eps: (B, OUT).

    Returns (z, mu, log_var), each (B, OUT) float32.
    """
    B, IN = x.shape
    OUT = w_mu.shape[1]

    OUT_pad = _round_up(OUT, 128)                 # lane-dense output tiles
    TM = min(max_tm, _round_up(B, 8))             # batch tile (sublane-aligned)
    B_pad = _round_up(B, TM)

    # Pack & zero-pad parameters: [W_mu | W_lv] -> (IN, 2*OUT_pad)
    def pad_w(w):
        return jnp.pad(w, ((0, 0), (0, OUT_pad - OUT)))

    def pad_b(b):
        return jnp.pad(b, (0, OUT_pad - OUT))

    w_fused = jnp.concatenate([pad_w(w_mu), pad_w(w_lv)], axis=1)       # (IN, 2*OUT_pad)
    b_fused = jnp.concatenate([pad_b(b_mu), pad_b(b_lv)])[None, :]      # (1,  2*OUT_pad)

    x_p = jnp.pad(x, ((0, B_pad - B), (0, 0)))
    eps_p = jnp.pad(eps, ((0, B_pad - B), (0, OUT_pad - OUT)))

    grid = (B_pad // TM,)
    out_shapes = tuple(jax.ShapeDtypeStruct((B_pad, OUT_pad), jnp.float32)
                       for _ in range(3))

    kernel = functools.partial(gaussian_sample_kernel, out_pad=OUT_pad)

    cost = pl.CostEstimate(
        flops=2 * B_pad * IN * (2 * OUT_pad) + 6 * B_pad * OUT_pad,
        transcendentals=3 * B_pad * OUT_pad,
        bytes_accessed=4 * (B_pad * IN + IN * 2 * OUT_pad + 2 * OUT_pad
                            + B_pad * OUT_pad + 3 * B_pad * OUT_pad),
    )

    z, mu, lv = pl.pallas_call(
        kernel,
        out_shape=out_shapes,
        grid=grid,
        in_specs=[
            pl.BlockSpec((TM, IN), lambda i: (i, 0)),            # x tile
            pl.BlockSpec((IN, 2 * OUT_pad), lambda i: (0, 0)),   # fused W (resident)
            pl.BlockSpec((1, 2 * OUT_pad), lambda i: (0, 0)),    # fused bias (resident)
            pl.BlockSpec((TM, OUT_pad), lambda i: (i, 0)),       # eps tile
        ],
        out_specs=[
            pl.BlockSpec((TM, OUT_pad), lambda i: (i, 0)),       # z
            pl.BlockSpec((TM, OUT_pad), lambda i: (i, 0)),       # mu
            pl.BlockSpec((TM, OUT_pad), lambda i: (i, 0)),       # log_var
        ],
        compiler_params=pltpu.CompilerParams(
            dimension_semantics=("parallel",),        # megacore-shardable batch axis
            vmem_limit_bytes=48 * 1024 * 1024,        # safe on v7x (64 MiB physical)
        ),
        cost_estimate=cost,
    )(x_p, w_fused, b_fused, eps_p)

    return z[:B, :OUT], mu[:B, :OUT], lv[:B, :OUT]


def reference(x, w_mu, b_mu, w_lv, b_lv, eps):
    mu = x @ w_mu + b_mu
    log_var = jax.nn.softplus(x @ w_lv + b_lv)
    std = jnp.exp(0.5 * log_var)
    return mu + std * eps, mu, log_var


if __name__ == "__main__":
    B, IN, OUT = 8, 32, 16

    key = jax.random.PRNGKey(0)
    kx, kwm, kbm, kwl, kbl, keps = jax.random.split(key, 6)

    x = jax.random.normal(kx, (B, IN), dtype=jnp.float32)
    # Deterministic parameter init (mimics nn.Linear's uniform(-1/sqrt(in), 1/sqrt(in)))
    bound = 1.0 / jnp.sqrt(IN)
    w_mu = jax.random.uniform(kwm, (IN, OUT), minval=-bound, maxval=bound, dtype=jnp.float32)
    b_mu = jax.random.uniform(kbm, (OUT,), minval=-bound, maxval=bound, dtype=jnp.float32)
    w_lv = jax.random.uniform(kwl, (IN, OUT), minval=-bound, maxval=bound, dtype=jnp.float32)
    b_lv = jax.random.uniform(kbl, (OUT,), minval=-bound, maxval=bound, dtype=jnp.float32)
    eps = jax.random.normal(keps, (B, OUT), dtype=jnp.float32)

    fn = jax.jit(gaussian_sample)
    z, mu, log_var = fn(x, w_mu, b_mu, w_lv, b_lv, eps)
    jax.block_until_ready((z, mu, log_var))

    z_ref, mu_ref, lv_ref = reference(x, w_mu, b_mu, w_lv, b_lv, eps)
    assert jnp.allclose(z, z_ref, atol=1e-5), "z mismatch"
    assert jnp.allclose(mu, mu_ref, atol=1e-5), "mu mismatch"
    assert jnp.allclose(log_var, lv_ref, atol=1e-5), "log_var mismatch"

    print("KERNEL_OK")
</pallas_src>

<mosaic_0001>
module attributes {stable_mosaic.version = 11 : i64} {
  func.func @gaussian_sample_kernel(%arg0: i32, %arg1: memref<8x32xf32, #tpu.memory_space<vmem>>, %arg2: memref<32x256xf32, #tpu.memory_space<vmem>>, %arg3: memref<1x256xf32, #tpu.memory_space<vmem>>, %arg4: memref<8x128xf32, #tpu.memory_space<vmem>>, %arg5: memref<8x128xf32, #tpu.memory_space<vmem>>, %arg6: memref<8x128xf32, #tpu.memory_space<vmem>>, %arg7: memref<8x128xf32, #tpu.memory_space<vmem>>) attributes {dimension_semantics = [#tpu.dimension_semantics<parallel>], iteration_bounds = array<i64: 1>, scalar_prefetch = 0 : i64, scratch_operands = 0 : i64, tpu.core_type = #tpu.core_type<tc>, window_params = [{transform_indices = @transform_0, window_bounds = array<i64: 8, 32>}, {pipeline_mode = #tpu.pipeline_mode<synchronous>, transform_indices = @transform_1, window_bounds = array<i64: 32, 256>}, {pipeline_mode = #tpu.pipeline_mode<synchronous>, transform_indices = @transform_2, window_bounds = array<i64: 1, 256>}, {transform_indices = @transform_3, window_bounds = array<i64: 8, 128>}, {transform_indices = @transform_4, window_bounds = array<i64: 8, 128>}, {transform_indices = @transform_5, window_bounds = array<i64: 8, 128>}, {transform_indices = @transform_6, window_bounds = array<i64: 8, 128>}]} {
    %c0 = arith.constant 0 : index
    %c0_0 = arith.constant 0 : index
    %0 = vector.load %arg1[%c0, %c0_0] : memref<8x32xf32, #tpu.memory_space<vmem>>, vector<8x32xf32>
    %c0_1 = arith.constant 0 : index
    %c0_2 = arith.constant 0 : index
    %1 = vector.load %arg2[%c0_1, %c0_2] : memref<32x256xf32, #tpu.memory_space<vmem>>, vector<32x256xf32>
    %cst = arith.constant dense<0.000000e+00> : vector<8x256xf32>
    %2 = tpu.matmul %0, %1, %cst {dimension_numbers = #tpu.dot_dimension_numbers<[1], [0], [0], [1], [0, 0, 1, 1], [], []>} : vector<8x32xf32>, vector<32x256xf32>, vector<8x256xf32> -> vector<8x256xf32>
    %c0_3 = arith.constant 0 : index
    %c0_4 = arith.constant 0 : index
    %3 = vector.load %arg3[%c0_3, %c0_4] : memref<1x256xf32, #tpu.memory_space<vmem>>, vector<1x256xf32>
    %4 = vector.broadcast %3 : vector<1x256xf32> to vector<8x256xf32>
    %5 = arith.addf %2, %4 : vector<8x256xf32>
    %6 = vector.extract_strided_slice %5 {offsets = [0, 0], sizes = [8, 128], strides = [1, 1]} : vector<8x256xf32> to vector<8x128xf32>
    %c0_5 = arith.constant 0 : index
    %c0_6 = arith.constant 0 : index
    %7 = vector.load %arg6[%c0_5, %c0_6] : memref<8x128xf32, #tpu.memory_space<vmem>>, vector<8x128xf32>
    tpu.vector_store %arg6[%c0_5, %c0_6], %6 {strides = array<i32>} : memref<8x128xf32, #tpu.memory_space<vmem>>, vector<8x128xf32>,
    %8 = vector.extract_strided_slice %5 {offsets = [0, 128], sizes = [8, 128], strides = [1, 1]} : vector<8x256xf32> to vector<8x128xf32>
    %cst_7 = arith.constant 0.000000e+00 : f32
    %9 = vector.broadcast %cst_7 : f32 to vector<8x128xf32>
    %10 = arith.maximumf %8, %9 : vector<8x128xf32>
    %11 = math.absf %8 : vector<8x128xf32>
    %cst_8 = arith.constant 0.000000e+00 : f32
    %12 = vector.broadcast %cst_8 : f32 to vector<8x128xf32>
    %13 = arith.subf %12, %11 : vector<8x128xf32>
    %14 = math.exp %13 : vector<8x128xf32>
    %15 = math.log1p %14 : vector<8x128xf32>
    %16 = arith.addf %10, %15 : vector<8x128xf32>
    %c0_9 = arith.constant 0 : index
    %c0_10 = arith.constant 0 : index
    %17 = vector.load %arg7[%c0_9, %c0_10] : memref<8x128xf32, #tpu.memory_space<vmem>>, vector<8x128xf32>
    tpu.vector_store %arg7[%c0_9, %c0_10], %16 {strides = array<i32>} : memref<8x128xf32, #tpu.memory_space<vmem>>, vector<8x128xf32>,
    %cst_11 = arith.constant 5.000000e-01 : f32
    %18 = vector.broadcast %cst_11 : f32 to vector<8x128xf32>
    %19 = arith.mulf %18, %16 : vector<8x128xf32>
    %20 = math.exp %19 : vector<8x128xf32>
    %c0_12 = arith.constant 0 : index
    %c0_13 = arith.constant 0 : index
    %21 = vector.load %arg4[%c0_12, %c0_13] : memref<8x128xf32, #tpu.memory_space<vmem>>, vector<8x128xf32>
    %22 = arith.mulf %20, %21 : vector<8x128xf32>
    %23 = arith.addf %6, %22 : vector<8x128xf32>
    %c0_14 = arith.constant 0 : index
    %c0_15 = arith.constant 0 : index
    %24 = vector.load %arg5[%c0_14, %c0_15] : memref<8x128xf32, #tpu.memory_space<vmem>>, vector<8x128xf32>
    tpu.vector_store %arg5[%c0_14, %c0_15], %23 {strides = array<i32>} : memref<8x128xf32, #tpu.memory_space<vmem>>, vector<8x128xf32>,
    return
  }
  func.func @transform_0(%arg0: i32) -> (i32, i32) {
    %c0_i32 = arith.constant 0 : i32
    %c0_i32_0 = arith.constant 0 : i32
    return %arg0, %c0_i32 : i32, i32
  }
  func.func @transform_1(%arg0: i32) -> (i32, i32) {
    %c0_i32 = arith.constant 0 : i32
    %c0_i32_0 = arith.constant 0 : i32
    %c0_i32_1 = arith.constant 0 : i32
    return %c0_i32, %c0_i32_0 : i32, i32
  }
  func.func @transform_2(%arg0: i32) -> (i32, i32) {
    %c0_i32 = arith.constant 0 : i32
    %c0_i32_0 = arith.constant 0 : i32
    %c0_i32_1 = arith.constant 0 : i32
    return %c0_i32, %c0_i32_0 : i32, i32
  }
  func.func @transform_3(%arg0: i32) -> (i32, i32) {
    %c0_i32 = arith.constant 0 : i32
    %c0_i32_0 = arith.constant 0 : i32
    return %arg0, %c0_i32 : i32, i32
  }
  func.func @transform_4(%arg0: i32) -> (i32, i32) {
    %c0_i32 = arith.constant 0 : i32
    %c0_i32_0 = arith.constant 0 : i32
    return %arg0, %c0_i32 : i32, i32
  }
  func.func @transform_5(%arg0: i32) -> (i32, i32) {
    %c0_i32 = arith.constant 0 : i32
    %c0_i32_0 = arith.constant 0 : i32
    return %arg0, %c0_i32 : i32, i32
  }
  func.func @transform_6(%arg0: i32) -> (i32, i32) {
    %c0_i32 = arith.constant 0 : i32
    %c0_i32_0 = arith.constant 0 : i32
    return %arg0, %c0_i32 : i32, i32
  }
}

</mosaic_0001>

<llo_original>
// kernel: gaussian_sample.1
$region0: #{gaussian_sample.1}
  #allocation0 [shape = 'u32[]', space=smem, size = 0x4, offset = 0x4, fixed_abs, tag = 'smem constant byte address 0x4 - core index']
  #allocation1 [shape = 'u32[144,128]{1,0:T(1,128)}', space=vmem, size = 0x12000, scoped, tag = 'internal scratch']
  %s0 = inlined_call_operand.vmem [shape: f32[8,32], index: 0, kind: input, shape index: {}]
  %s1 = inlined_call_operand.vmem [shape: f32[32,256], index: 1, kind: input, shape index: {}]
  %s2 = inlined_call_operand.vmem [shape: f32[1,256], index: 2, kind: input, shape index: {}]
  %s3 = inlined_call_operand.vmem [shape: f32[8,128], index: 3, kind: input, shape index: {}]
  %s4 = inlined_call_operand.hbm [shape: f32[8,128], index: 4, kind: output, shape index: {0}]
  %s5 = inlined_call_operand.hbm [shape: f32[8,128], index: 5, kind: output, shape index: {1}]
  %s6 = inlined_call_operand.hbm [shape: f32[8,128], index: 6, kind: output, shape index: {2}]
  %7 = xla_tuple %s4, %s5, %s6
  %s8 = sld [smem:[#allocation0]]
  $region42: #{gaussian_sample.1} parent=0
    _
  %s10 = ssub.s32 1, %s8
  %s11 = scalar_select 0, %s10, %s8
  $region1: #{gaussian_sample.1} parent=0
    #allocation2 [shape = 'u8[4096]{0}', space=vmem, size = 0x1000, scoped, tag = 'output window, operand 0, single buffered']
    #allocation3 [shape = 's32[1]{0}', space=sflag, size = 0x4, scoped, tag = 'scoped memory for gaussian_sample.1']
    #allocation4 [shape = 'u8[4096]{0}', space=vmem, size = 0x1000, scoped, tag = 'output window, operand 1, single buffered']
    #allocation5 [shape = 's32[1]{0}', space=sflag, size = 0x4, scoped, tag = 'scoped memory for gaussian_sample.1']
    #allocation6 [shape = 'u8[4096]{0}', space=vmem, size = 0x1000, scoped, tag = 'output window, operand 2, single buffered']
    %12 = vsyncpa [#allocation3], 0
    %13 = vsyncpa [#allocation5], 0
    // Predicated region
    $region2: #{gaussian_sample.1} parent=1 // pred_check
      _
    $region3: #{gaussian_sample.1} parent=1 // pred_check_branch
      %15 = sbr.rel (0) target = $region5
    $region4: #{gaussian_sample.1} parent=1 // pred_region
      _
    $region5: #{gaussian_sample.1} parent=1 // pred_fallthru
      _
    // Predicated region
    $region6: #{gaussian_sample.1} parent=1 // pred_check
      _
    $region7: #{gaussian_sample.1} parent=1 // pred_check_branch
      %17 = sbr.rel (0) target = $region9
    $region8: #{gaussian_sample.1} parent=1 // pred_region
      _
    $region9: #{gaussian_sample.1} parent=1 // pred_fallthru
      _
    // Predicated region
    $region10: #{gaussian_sample.1} parent=1 // pred_check
      _
    $region11: #{gaussian_sample.1} parent=1 // pred_check_branch
      %19 = sbr.rel (0) target = $region13
    $region12: #{gaussian_sample.1} parent=1 // pred_region
      _
    $region13: #{gaussian_sample.1} parent=1 // pred_fallthru
      _
    // Predicated region
    $region14: #{gaussian_sample.1} parent=1 // pred_check
      _
    $region15: #{gaussian_sample.1} parent=1 // pred_check_branch
      %21 = sbr.rel (0) target = $region17
    $region16: #{gaussian_sample.1} parent=1 // pred_region
      _
    $region17: #{gaussian_sample.1} parent=1 // pred_fallthru
      _
    %v22 = vld [vmem:[%s0] sm:$0xff]
    %v23 = vld [vmem:[%s1] sm:$0xff]
    %v24 = vld [vmem:[%s1 + $0x8] sm:$0xff]
    %v25 = vld [vmem:[%s1 + $0x10] sm:$0xff]
    %v26 = vld [vmem:[%s1 + $0x18] sm:$0xff]
    %v27 = vld [vmem:[%s1 + $0x20] sm:$0xff]
    %v28 = vld [vmem:[%s1 + $0x28] sm:$0xff]
    %v29 = vld [vmem:[%s1 + $0x30] sm:$0xff]
    %v30 = vld [vmem:[%s1 + $0x38] sm:$0xff]
    %v31 = vld [vmem:[%s2] sm:$0x3]
    %v33 = vlaneseq
    %v34 = vshrl.u32 %v33, 7
    %v35 = vsub.s32 0, %v34
    %v36 = vrot.slane %v31, %v35
    %v37 = vlaneseq
    %v38 = vshrl.u32 %v37, 7
    %v39 = vsub.s32 1, %v38
    %v40 = vrot.slane %v31, %v39
    %vm43 = vcmask 261120
    %v45 = vsel %vm43, %v22, 0
    %47 = vmatprep.subr.mxu0 %v24
    %48 = vmatpush1.msra.mxu0 %v23
    %49 = vmatprep.subr.mxu0 %v26
    %50 = vmatpush1.msra.mxu0 %v25
    %51 = vmatprep.subr.mxu0 %v28
    %52 = vmatpush1.msra.mxu0 %v27
    %53 = vmatprep.subr.mxu0 %v30
    %54 = vmatpush1.msra.mxu0 %v29
    %55 = vmatprep.subr.mxu0 0.0
    %56 = vmatpush1.msra.mxu0 0.0
    %57 = vmatprep.subr.mxu0 0.0
    %58 = vmatpush1.msra.mxu0 0.0
    %59 = vmatprep.subr.mxu0 0.0
    %60 = vmatpush1.msra.mxu0 0.0
    %61 = vmatprep.subr.mxu0 0.0
    %62 = vmatpush1.msra.mxu0 0.0
    %63 = vmatprep.subr.mxu0 0.0
    %64 = vmatpush1.msra.mxu0 0.0
    %65 = vmatprep.subr.mxu0 0.0
    %66 = vmatpush1.msra.mxu0 0.0
    %67 = vmatprep.subr.mxu0 0.0
    %68 = vmatpush1.msra.mxu0 0.0
    %69 = vmatprep.subr.mxu0 0.0
    %70 = vmatpush1.msra.mxu0 0.0
    %71 = vmatprep.subr.mxu0 0.0
    %72 = vmatpush1.msra.mxu0 0.0
    %73 = vmatprep.subr.mxu0 0.0
    %74 = vmatpush1.msra.mxu0 0.0
    %75 = vmatprep.subr.mxu0 0.0
    %76 = vmatpush1.msra.mxu0 0.0
    %77 = vmatprep.subr.mxu0 0.0
    %78 = vmatpush1.msra.mxu0 0.0
    %79 = vmatprep.subr.mxu0 0.0
    %80 = vmatpush1.msra.mxu0 0.0
    %81 = vmatprep.subr.mxu0 0.0
    %82 = vmatpush1.msra.mxu0 0.0
    %83 = vmatprep.subr.mxu0 0.0
    %84 = vmatpush1.msra.mxu0 0.0
    %85 = vmatprep.subr.mxu0 0.0
    %86 = vmatpush1.msra.mxu0 0.0
    %87 = vmatprep.subr.mxu0 0.0
    %88 = vmatpush1.msra.mxu0 0.0
    %89 = vmatprep.subr.mxu0 0.0
    %90 = vmatpush1.msra.mxu0 0.0
    %91 = vmatprep.subr.mxu0 0.0
    %92 = vmatpush1.msra.mxu0 0.0
    %93 = vmatprep.subr.mxu0 0.0
    %94 = vmatpush1.msra.mxu0 0.0
    %95 = vmatprep.subr.mxu0 0.0
    %96 = vmatpush1.msra.mxu0 0.0
    %97 = vmatprep.subr.mxu0 0.0
    %98 = vmatpush1.msra.mxu0 0.0
    %99 = vmatprep.subr.mxu0 0.0
    %100 = vmatpush1.msra.mxu0 0.0
    %101 = vmatprep.subr.mxu0 0.0
    %102 = vmatpush1.msra.mxu0 0.0
    %103 = vmatprep.subr.mxu0 0.0
    %104 = vmatpush1.msra.mxu0 0.0
    %105 = vmatprep.subr.mxu0 0.0
    %106 = vmatpush1.msra.mxu0 0.0
    %107 = vmatprep.subr.mxu0 0.0
    %108 = vmatpush1.msra.mxu0 0.0
    %109 = vmatprep.subr.mxu0 0.0
    %110 = vmatpush1.msra.mxu0 0.0
    %111 = vmatprep.mubr.f32.mxu0 0.0
    %112 = vmatmul.mubr.f32.gmra.mrb[0].mxu0 %v45
    %v113 = vpop.f32.mrb[0].mxu0
    %v114 = vadd.f32 %v36, %v113
    %v115 = vpop.f32.mrb[0].mxu0
    %v116 = vadd.f32 %v40, %v115
    %117 = vdwg.mxu0
    %118 = vst [vmem:[#allocation4] sm:$0xff] %v114
    %v119 = vmax.f32 %v116, 0.0
    %v120 = vand.u32 2147483647, %v116
    %v121 = vsub.f32 0.0, %v120
    %v122 = vmul.f32 %v121, 1.442695
    %v123 = vpow.pop %v122
    %v124 = vadd.f32 %v123, 1.0
    %v125 = vlog2.pop %v124
    %v126 = vmul.f32 %v125, 0.6931472
    %v127 = vmul.f32 -0.5, %v123
    %v128 = vadd.f32 %v127, 1.0
    %v129 = vmul.f32 %v128, %v123
    %v130 = vand.u32 2147483647, %v123
    %vm131 = vcmp.lt.f32.partialorder %v130, 0.0004427343
    %v132 = vsel %vm131, %v129, %v126
    %v133 = vadd.f32 %v119, %v132
    %134 = vst [vmem:[#allocation6] sm:$0xff] %v133
    %v135 = vmul.f32 %v133, 0.5
    %v136 = vmul.f32 %v135, 1.442695
    %v137 = vpow.pop %v136
    %v138 = vld [vmem:[%s3] sm:$0xff]
    %v139 = vmul.f32 %v137, %v138
    %v140 = vadd.f32 %v114, %v139
    %141 = vst [vmem:[#allocation2] sm:$0xff] %v140
    // Predicated region
    $region18: #{gaussian_sample.1} parent=1 // pred_check
      _
    $region19: #{gaussian_sample.1} parent=1 // pred_check_branch
      %143 = sbr.rel (0) target = $region21
    $region20: #{gaussian_sample.1} parent=1 // pred_region
      %s145 = ssub.s32 128, 128
      %146 = vsyncadd [#allocation3], %s145
      %s148 = sshll.u32 [#allocation2], 4
      %s149 = int_to_ptr.vmem [resolvable:$true] %s148
      %151 = dma.vmem_to_hbm [thread:$0]  %s149, 128, %s4, [#allocation3]
    $region21: #{gaussian_sample.1} parent=1 // pred_fallthru
      _
    // Predicated region
    $region22: #{gaussian_sample.1} parent=1 // pred_check
      _
    $region23: #{gaussian_sample.1} parent=1 // pred_check_branch
      %153 = sbr.rel (0) target = $region25
    $region24: #{gaussian_sample.1} parent=1 // pred_region
      %s155 = ssub.s32 128, 128
      %156 = vsyncadd [#allocation5], %s155
      %s158 = sshll.u32 [#allocation4], 4
      %s159 = int_to_ptr.vmem [resolvable:$true] %s158
      %161 = dma.vmem_to_hbm [thread:$0]  %s159, 128, %s5, [#allocation5]
    $region25: #{gaussian_sample.1} parent=1 // pred_fallthru
      _
    // Predicated region
    $region26: #{gaussian_sample.1} parent=1 // pred_check
      _
    $region27: #{gaussian_sample.1} parent=1 // pred_check_branch
      %163 = sbr.rel (0) target = $region29
    $region28: #{gaussian_sample.1} parent=1 // pred_region
      %s165 = ssub.s32 128, 128
      %166 = vsyncadd [#allocation5], %s165
      %s168 = sshll.u32 [#allocation6], 4
      %s169 = int_to_ptr.vmem [resolvable:$true] %s168
      %171 = dma.vmem_to_hbm [thread:$0]  %s169, 128, %s6, [#allocation5]
    $region29: #{gaussian_sample.1} parent=1 // pred_fallthru
      _
    // Predicated region
    $region30: #{gaussian_sample.1} parent=1 // pred_check
      _
    $region31: #{gaussian_sample.1} parent=1 // pred_check_branch
      %173 = sbr.rel (0) target = $region33
    $region32: #{gaussian_sample.1} parent=1 // pred_region
      %174 = dma.done [#allocation3], 128
    $region33: #{gaussian_sample.1} parent=1 // pred_fallthru
      _
    // Predicated region
    $region34: #{gaussian_sample.1} parent=1 // pred_check
      _
    $region35: #{gaussian_sample.1} parent=1 // pred_check_branch
      %176 = sbr.rel (0) target = $region37
    $region36: #{gaussian_sample.1} parent=1 // pred_region
      %177 = dma.done [#allocation5], 128
    $region37: #{gaussian_sample.1} parent=1 // pred_fallthru
      _
    // Predicated region
    $region38: #{gaussian_sample.1} parent=1 // pred_check
      _
    $region39: #{gaussian_sample.1} parent=1 // pred_check_branch
      %179 = sbr.rel (0) target = $region41
    $region40: #{gaussian_sample.1} parent=1 // pred_region
      %180 = dma.done [#allocation5], 128
    $region41: #{gaussian_sample.1} parent=1 // pred_fallthru
      _
    %181 = vsyncpa [#allocation3], 1
    %182 = vsyncpa [#allocation5], 1

</llo_original>
